<compile_context>
chip_gen: v7x
topology: tpu7x:2x2x1
jax: 0.10.0
libtpu: 0.0.40
codegen_flags: <defaults>
</compile_context>

<pallas_src>
import functools

import jax
import jax.numpy as jnp
from jax import lax
from jax.experimental import pallas as pl
from jax.experimental.pallas import tpu as pltpu


def _round_up(x: int, m: int) -> int:
    return (x + m - 1) // m * m


def _round_down(x: int, m: int) -> int:
    return max(m, x // m * m)


def _vmem_budget_bytes() -> int:
    """Usable VMEM budget, derived from the actual part (v7x=64MiB, v5e/v6e=128MiB)."""
    try:
        cap = int(pltpu.get_tpu_info().vmem_capacity_bytes)
    except Exception:
        cap = 64 << 20          # conservative default: v7x physical VMEM per TC
    return max(cap - (16 << 20), 32 << 20)   # headroom for Mosaic scratch


def _pick_batch_tile(batch: int, per_row_bytes: int, tile_budget: int,
                     max_tile: int = 1024) -> int:
    """Largest batch tile (multiple of 8) whose pipelined footprint fits VMEM."""
    t = int(tile_budget // max(per_row_bytes, 1))
    t = max(8, min(max_tile, _round_down(t, 8)))
    b8 = _round_up(batch, 8)
    t = min(t, b8)
    # v7x has 2 TensorCores: keep >= 2 grid steps on the parallel axis when
    # the batch is big enough to split.
    if t >= b8 and b8 >= 16:
        t = _round_up(b8 // 2, 8)
    return t


# ------------------- Fused tower: ids -> counts @ fused_W --------------------

def _fused_tower_kernel(ids_ref, w_ref, b_ref, h_ref, *, vocab_pad):
    # ids_ref: (TB, S) int32 token ids
    # w_ref:   (Vp, Hp) bf16 fused weight = (1/S) * embedding_table @ W
    # b_ref:   (1, Hp)  f32 bias
    # h_ref:   (TB, Hp) bf16 tower activations
    ids = ids_ref[...]
    tb, s = ids.shape
    # Token histogram built lane-dense over the padded vocab: the embedding
    # gather + mean pool collapse into a single MXU contraction.
    onehot = (ids[:, :, None] ==
              lax.broadcasted_iota(jnp.int32, (tb, s, vocab_pad), 2))
    counts = jnp.sum(onehot.astype(jnp.float32), axis=1)         # (TB, Vp)
    pre = lax.dot_general(counts.astype(jnp.bfloat16), w_ref[...],
                          dimension_numbers=(((1,), (0,)), ((), ())),
                          preferred_element_type=jnp.float32)    # (TB, Hp)
    h_ref[...] = jnp.maximum(pre + b_ref[...], 0.0).astype(h_ref.dtype)


def fused_tower_forward(ids, fused_w, bias):
    """ids (B,S) int32, fused_w (Vp,Hp) bf16, bias (1,Hp) f32 -> (B,Hp) bf16."""
    B, S = ids.shape
    Vp, Hp = fused_w.shape
    budget = _vmem_budget_bytes()

    resident = Vp * Hp * 2 + Hp * 4
    # ids (2 bufs) + in-kernel one-hot (f32) + counts + out (2 bufs), per row.
    per_row = 2 * S * 4 + S * Vp * 4 + Vp * 4 + 2 * Hp * 2
    tile_b = _pick_batch_tile(B, per_row, max(budget - resident - (4 << 20), 1 << 20))
    B_pad = _round_up(B, tile_b)
    if B_pad != B:
        ids = jnp.pad(ids, ((0, B_pad - B), (0, 0)))   # pad rows gather token 0; sliced away
    vmem_limit = max(min(resident + tile_b * per_row + (4 << 20), budget), 16 << 20)

    h = pl.pallas_call(
        functools.partial(_fused_tower_kernel, vocab_pad=Vp),
        out_shape=jax.ShapeDtypeStruct((B_pad, Hp), jnp.bfloat16),
        grid=(B_pad // tile_b,),
        in_specs=[
            pl.BlockSpec((tile_b, S), lambda i: (i, 0)),    # pipelined token ids
            pl.BlockSpec((Vp, Hp), lambda i: (0, 0)),       # resident fused weight
            pl.BlockSpec((1, Hp), lambda i: (0, 0)),        # resident bias
        ],
        out_specs=pl.BlockSpec((tile_b, Hp), lambda i: (i, 0)),
        compiler_params=pltpu.CompilerParams(
            dimension_semantics=("parallel",),
            vmem_limit_bytes=vmem_limit),
    )(ids, fused_w, bias)
    return h[:B]


# ------------- Dense fallback tower (large vocab): pre-gathered path ---------

def _matvec_tower_kernel(x_ref, w_ref, b_ref, h_ref):
    # x_ref: (TB, K) bf16 -- K = S*E, mean pool already folded into w_ref.
    pre = lax.dot_general(x_ref[...], w_ref[...],
                          dimension_numbers=(((1,), (0,)), ((), ())),
                          preferred_element_type=jnp.float32)
    h_ref[...] = jnp.maximum(pre + b_ref[...], 0.0).astype(h_ref.dtype)


def _pooled_tower_kernel(x_ref, w_ref, b_ref, h_ref, *, inv_s):
    # x_ref: (TB, S, E) bf16 -> sum pool + one scale (no per-element divide).
    pooled = jnp.sum(x_ref[...].astype(jnp.float32), axis=1) * inv_s
    pre = lax.dot_general(pooled.astype(jnp.bfloat16), w_ref[...],
                          dimension_numbers=(((1,), (0,)), ((), ())),
                          preferred_element_type=jnp.float32)
    h_ref[...] = jnp.maximum(pre + b_ref[...], 0.0).astype(h_ref.dtype)


def dense_tower_forward(emb, w, bias):
    """emb (B,S,E), w (E,Hp) f32, bias (1,Hp) f32 -> (B,Hp) bf16.

    Fallback for vocabularies too large to keep a fused weight resident in
    VMEM: consumes a pre-gathered (B,S,E) tensor (kept bf16 in HBM)."""
    B, S, E = emb.shape
    Hp = w.shape[1]
    emb = emb.astype(jnp.bfloat16)
    budget = _vmem_budget_bytes()

    fold_pool = S * E * Hp * 2 <= (16 << 20)   # W tiled over S stays resident
    if fold_pool:
        # Fold the mean pool into the MXU contraction: (B, S*E) @ W_tiled.
        w_in = (jnp.tile(w, (S, 1)) * (1.0 / S)).astype(jnp.bfloat16)   # (S*E, Hp)
        x = emb.reshape(B, S * E)
        resident = S * E * Hp * 2 + Hp * 4
        per_row = 2 * S * E * 2 + 2 * Hp * 2
        kernel = _matvec_tower_kernel
        make_in_spec = lambda tb: pl.BlockSpec((tb, S * E), lambda i: (i, 0))
        w_spec = pl.BlockSpec((S * E, Hp), lambda i: (0, 0))
    else:
        w_in = w.astype(jnp.bfloat16)
        x = emb
        resident = E * Hp * 2 + Hp * 4
        per_row = 2 * S * E * 2 + S * E * 4 + 2 * Hp * 2   # + f32 pooling temp
        kernel = functools.partial(_pooled_tower_kernel, inv_s=1.0 / S)
        make_in_spec = lambda tb: pl.BlockSpec((tb, S, E), lambda i: (i, 0, 0))
        w_spec = pl.BlockSpec((E, Hp), lambda i: (0, 0))

    tile_b = _pick_batch_tile(B, per_row, max(budget - resident - (4 << 20), 1 << 20))
    B_pad = _round_up(B, tile_b)
    if B_pad != B:
        x = jnp.pad(x, ((0, B_pad - B),) + ((0, 0),) * (x.ndim - 1))
    vmem_limit = max(min(resident + tile_b * per_row + (4 << 20), budget), 16 << 20)

    h = pl.pallas_call(
        kernel,
        out_shape=jax.ShapeDtypeStruct((B_pad, Hp), jnp.bfloat16),
        grid=(B_pad // tile_b,),
        in_specs=[make_in_spec(tile_b), w_spec,
                  pl.BlockSpec((1, Hp), lambda i: (0, 0))],
        out_specs=pl.BlockSpec((tile_b, Hp), lambda i: (i, 0)),
        compiler_params=pltpu.CompilerParams(
            dimension_semantics=("parallel",),
            vmem_limit_bytes=vmem_limit),
    )(x, w_in, bias)
    return h[:B]


# ------------------------ Similarity: q @ d.T (tiled) ------------------------

def _sim_kernel(q_ref, dT_ref, o_ref):
    # Plain (M,K)@(K,N): the doc matrix was transposed once in the wrapper,
    # so no per-tile relayout/vxpose of the RHS is needed.
    o_ref[...] = lax.dot_general(q_ref[...], dT_ref[...],
                                 dimension_numbers=(((1,), (0,)), ((), ())),
                                 preferred_element_type=jnp.float32)


def similarity(qry_h, doc_h, *, tile_q=512, tile_d=512):
    """qry_h (Bq,Hp) bf16, doc_h (Bd,Hp) bf16 -> (Bq,Bd) f32 similarities."""
    Bq, Hp = qry_h.shape
    Bd = doc_h.shape[0]
    budget = _vmem_budget_bytes()

    tile_q = min(tile_q, _round_up(Bq, 8))
    tile_d = min(tile_d, _round_up(Bd, 128))     # lane-dense output stores
    # v7x: keep >= 2 grid steps when the problem is big enough to split.
    if (_round_up(Bq, tile_q) // tile_q) * (_round_up(Bd, tile_d) // tile_d) == 1:
        if tile_d >= 256:
            tile_d //= 2
        elif tile_q >= 16:
            tile_q = _round_up(tile_q // 2, 8)

    Bq_pad = _round_up(Bq, tile_q)
    Bd_pad = _round_up(Bd, tile_d)
    qry_h = jnp.pad(qry_h, ((0, Bq_pad - Bq), (0, 0)))
    # One-shot transpose of the tiny (Bd, Hp) doc matrix -> lane-dense RHS.
    doc_t = jnp.pad(doc_h, ((0, Bd_pad - Bd), (0, 0))).T          # (Hp, Bd_pad)

    footprint = (2 * tile_q * Hp * 2 + 2 * Hp * tile_d * 2
                 + 2 * tile_q * tile_d * 4 + (4 << 20))
    vmem_limit = max(min(footprint, budget), 16 << 20)

    out = pl.pallas_call(
        _sim_kernel,
        out_shape=jax.ShapeDtypeStruct((Bq_pad, Bd_pad), jnp.float32),
        grid=(Bq_pad // tile_q, Bd_pad // tile_d),
        in_specs=[
            pl.BlockSpec((tile_q, Hp), lambda i, j: (i, 0)),
            pl.BlockSpec((Hp, tile_d), lambda i, j: (0, j)),
        ],
        out_specs=pl.BlockSpec((tile_q, tile_d), lambda i, j: (i, j)),
        compiler_params=pltpu.CompilerParams(
            dimension_semantics=("parallel", "parallel"),
            vmem_limit_bytes=vmem_limit),
    )(qry_h, doc_t)
    return out[:Bq, :Bd]


# ------------------------------ Full forward --------------------------------

def two_tower_forward(documents, queries, embedding_table, wd, bd, wq, bq,
                      force_dense: bool = False):
    """documents/queries: (B, S) int32 token ids -> (Bq, Bd) f32 similarities."""
    vocab, E = embedding_table.shape
    H = wd.shape[1]
    Hp = _round_up(H, 128)            # pad hidden dim to a full 128-lane multiple
    S = documents.shape[1]

    pad_b = lambda b: jnp.pad(b.reshape(1, -1), ((0, 0), (0, Hp - H)))
    pad_w = lambda w: jnp.pad(w, ((0, 0), (0, Hp - H)))

    vocab_pad = _round_up(vocab, 128)
    # Fused (gather-free) path: valid when the fused weight and the in-kernel
    # one-hot stay comfortably inside VMEM.
    use_fused = (not force_dense
                 and vocab_pad * Hp * 2 <= (8 << 20)
                 and S * vocab_pad * 4 <= (4 << 20))

    if use_fused:
        def fused_weight(w):
            fw = (embedding_table @ w) * (1.0 / S)                      # (vocab, H) f32
            fw = jnp.pad(fw, ((0, vocab_pad - vocab), (0, Hp - H)))
            return fw.astype(jnp.bfloat16)
        doc_h = fused_tower_forward(documents.astype(jnp.int32),
                                    fused_weight(wd), pad_b(bd))
        qry_h = fused_tower_forward(queries.astype(jnp.int32),
                                    fused_weight(wq), pad_b(bq))
    else:
        # TODO(synk): for very large vocabularies, DMA-gather embedding rows
        # inside the kernel (scalar-prefetched ids + pl.ANY table ref) instead
        # of materializing the (B, S, E) tensor via jnp.take.
        doc_h = dense_tower_forward(
            jnp.take(embedding_table, documents, axis=0), pad_w(wd), pad_b(bd))
        qry_h = dense_tower_forward(
            jnp.take(embedding_table, queries, axis=0), pad_w(wq), pad_b(bq))

    return similarity(qry_h, doc_h)                                     # (Bq, Bd)


def reference_forward(documents, queries, table, wd, bd, wq, bq):
    """Pure-f32 JAX mirror of the PyTorch module's forward."""
    d = jnp.maximum(jnp.mean(jnp.take(table, documents, axis=0), axis=1) @ wd + bd, 0.0)
    q = jnp.maximum(jnp.mean(jnp.take(table, queries, axis=0), axis=1) @ wq + bq, 0.0)
    return q @ d.T


if __name__ == "__main__":
    # Small shapes consistent with the module defaults (scaled down).
    vocab_size = 64
    embed_dim = 128   # module default
    hidden_dim = 64   # module default
    seq = 8
    Bd = 8            # number of documents
    Bq = 8            # number of queries

    key = jax.random.PRNGKey(0)
    k_emb, k_wd, k_bd, k_wq, k_bq, k_doc, k_qry = jax.random.split(key, 7)

    embedding_table = jax.random.normal(k_emb, (vocab_size, embed_dim), jnp.float32) * 0.1
    wd = jax.random.normal(k_wd, (embed_dim, hidden_dim), jnp.float32) * 0.1
    bd = jax.random.normal(k_bd, (1, hidden_dim), jnp.float32) * 0.1
    wq = jax.random.normal(k_wq, (embed_dim, hidden_dim), jnp.float32) * 0.1
    bq = jax.random.normal(k_bq, (1, hidden_dim), jnp.float32) * 0.1

    documents = jax.random.randint(k_doc, (Bd, seq), 0, vocab_size, dtype=jnp.int32)
    queries = jax.random.randint(k_qry, (Bq, seq), 0, vocab_size, dtype=jnp.int32)

    ref = reference_forward(documents, queries, embedding_table, wd, bd, wq, bq)

    # Fused (gather-free) path.
    out = jax.block_until_ready(
        two_tower_forward(documents, queries, embedding_table, wd, bd, wq, bq))
    assert out.shape == (Bq, Bd)
    assert jnp.allclose(out, ref, atol=1e-2, rtol=2e-2), "fused path mismatch vs reference"

    # Large-vocab fallback path exercised as well (same small inputs).
    out_dense = jax.block_until_ready(
        two_tower_forward(documents, queries, embedding_table, wd, bd, wq, bq,
                          force_dense=True))
    assert jnp.allclose(out_dense, ref, atol=1e-2, rtol=2e-2), "dense path mismatch vs reference"

    print("KERNEL_OK")
</pallas_src>

<mosaic_0001>
module attributes {stable_mosaic.version = 11 : i64} {
  func.func @_fused_tower_kernel(%arg0: i32, %arg1: memref<8x8xi32, #tpu.memory_space<vmem>>, %arg2: memref<128x128xbf16, #tpu.memory_space<vmem>>, %arg3: memref<1x128xf32, #tpu.memory_space<vmem>>, %arg4: memref<8x128xbf16, #tpu.memory_space<vmem>>) attributes {dimension_semantics = [#tpu.dimension_semantics<parallel>], iteration_bounds = array<i64: 1>, scalar_prefetch = 0 : i64, scratch_operands = 0 : i64, tpu.core_type = #tpu.core_type<tc>, window_params = [{transform_indices = @transform_0, window_bounds = array<i64: 8, 8>}, {pipeline_mode = #tpu.pipeline_mode<synchronous>, transform_indices = @transform_1, window_bounds = array<i64: 128, 128>}, {pipeline_mode = #tpu.pipeline_mode<synchronous>, transform_indices = @transform_2, window_bounds = array<i64: 1, 128>}, {transform_indices = @transform_3, window_bounds = array<i64: 8, 128>}]} {
    %c0 = arith.constant 0 : index
    %c0_0 = arith.constant 0 : index
    %0 = vector.load %arg1[%c0, %c0_0] : memref<8x8xi32, #tpu.memory_space<vmem>>, vector<8x8xi32>
    %1 = vector.shape_cast %0 : vector<8x8xi32> to vector<8x8x1xi32>
    %2 = tpu.iota {dimensions = array<i32: 2>} : vector<8x8x128xi32>
    %3 = vector.broadcast %1 : vector<8x8x1xi32> to vector<8x8x128xi32>
    %4 = arith.cmpi eq, %3, %2 : vector<8x8x128xi32>
    %5 = arith.extui %4 : vector<8x8x128xi1> to vector<8x8x128xi32>
    %6 = arith.sitofp %5 : vector<8x8x128xi32> to vector<8x8x128xf32>
    %cst = arith.constant dense<0.000000e+00> : vector<8x128xf32>
    %7 = vector.multi_reduction <add>, %6, %cst [1] : vector<8x8x128xf32> to vector<8x128xf32>
    %8 = arith.truncf %7 : vector<8x128xf32> to vector<8x128xbf16>
    %c0_1 = arith.constant 0 : index
    %c0_2 = arith.constant 0 : index
    %9 = vector.load %arg2[%c0_1, %c0_2] : memref<128x128xbf16, #tpu.memory_space<vmem>>, vector<128x128xbf16>
    %cst_3 = arith.constant dense<0.000000e+00> : vector<8x128xf32>
    %10 = tpu.matmul %8, %9, %cst_3 {dimension_numbers = #tpu.dot_dimension_numbers<[1], [0], [0], [1], [0, 0, 1, 1], [], []>} : vector<8x128xbf16>, vector<128x128xbf16>, vector<8x128xf32> -> vector<8x128xf32>
    %c0_4 = arith.constant 0 : index
    %c0_5 = arith.constant 0 : index
    %11 = vector.load %arg3[%c0_4, %c0_5] : memref<1x128xf32, #tpu.memory_space<vmem>>, vector<1x128xf32>
    %12 = vector.broadcast %11 : vector<1x128xf32> to vector<8x128xf32>
    %13 = arith.addf %10, %12 : vector<8x128xf32>
    %cst_6 = arith.constant 0.000000e+00 : f32
    %14 = vector.broadcast %cst_6 : f32 to vector<8x128xf32>
    %15 = arith.maximumf %13, %14 : vector<8x128xf32>
    %16 = arith.truncf %15 : vector<8x128xf32> to vector<8x128xbf16>
    %c0_7 = arith.constant 0 : index
    %c0_8 = arith.constant 0 : index
    %17 = vector.load %arg4[%c0_7, %c0_8] : memref<8x128xbf16, #tpu.memory_space<vmem>>, vector<8x128xbf16>
    tpu.vector_store %arg4[%c0_7, %c0_8], %16 {strides = array<i32>} : memref<8x128xbf16, #tpu.memory_space<vmem>>, vector<8x128xbf16>,
    return
  }
  func.func @transform_0(%arg0: i32) -> (i32, i32) {
    %c0_i32 = arith.constant 0 : i32
    %c0_i32_0 = arith.constant 0 : i32
    return %arg0, %c0_i32 : i32, i32
  }
  func.func @transform_1(%arg0: i32) -> (i32, i32) {
    %c0_i32 = arith.constant 0 : i32
    %c0_i32_0 = arith.constant 0 : i32
    %c0_i32_1 = arith.constant 0 : i32
    return %c0_i32, %c0_i32_0 : i32, i32
  }
  func.func @transform_2(%arg0: i32) -> (i32, i32) {
    %c0_i32 = arith.constant 0 : i32
    %c0_i32_0 = arith.constant 0 : i32
    %c0_i32_1 = arith.constant 0 : i32
    return %c0_i32, %c0_i32_0 : i32, i32
  }
  func.func @transform_3(%arg0: i32) -> (i32, i32) {
    %c0_i32 = arith.constant 0 : i32
    %c0_i32_0 = arith.constant 0 : i32
    return %arg0, %c0_i32 : i32, i32
  }
}

</mosaic_0001>

<llo_original>
// kernel: tpu_custom_call.1
$region0: #{tpu_custom_call.1}
  #allocation0 [shape = 'u32[]', space=smem, size = 0x4, offset = 0x4, fixed_abs, tag = 'smem constant byte address 0x4 - core index']
  #allocation1 [shape = 'u32[144,128]{1,0:T(1,128)}', space=vmem, size = 0x12000, scoped, tag = 'internal scratch']
  %s0 = inlined_call_operand.hbm [shape: s32[8,8], index: 0, kind: input, shape index: {}]
  %s1 = inlined_call_operand.hbm [shape: bf16[128,128], index: 1, kind: input, shape index: {}]
  %s2 = inlined_call_operand.vmem [shape: f32[1,128], index: 2, kind: input, shape index: {}]
  %s3 = inlined_call_operand.hbm [shape: bf16[8,128], index: 3, kind: output, shape index: {}]
  %s4 = sld [smem:[#allocation0]]
  $region30: #{tpu_custom_call.1} parent=0
    _
  %s6 = ssub.s32 1, %s4
  %s7 = scalar_select 0, %s6, %s4
  $region1: #{tpu_custom_call.1} parent=0
    #allocation2 [shape = 'u8[4096]{0}', space=vmem, size = 0x1000, scoped, tag = 'input window, operand 0, single buffered']
    #allocation3 [shape = 's32[1]{0}', space=sflag, size = 0x4, scoped, tag = 'scoped memory for tpu_custom_call.1']
    #allocation4 [shape = 's32[1]{0}', space=sflag, size = 0x4, scoped, tag = 'scoped memory for tpu_custom_call.1']
    #allocation5 [shape = 'u8[32768]{0}', space=vmem, size = 0x8000, scoped, tag = 'input window, operand 1, single buffered']
    #allocation6 [shape = 's32[1]{0}', space=sflag, size = 0x4, scoped, tag = 'scoped memory for tpu_custom_call.1']
    #allocation7 [shape = 'u8[2048]{0}', space=vmem, size = 0x800, scoped, tag = 'output window, operand 0, single buffered']
    %8 = vsyncpa [#allocation3], 0
    %9 = vsyncpa [#allocation6], 0
    %10 = vsyncpa [#allocation4], 0
    // Predicated region
    $region2: #{tpu_custom_call.1} parent=1 // pred_check
      _
    $region3: #{tpu_custom_call.1} parent=1 // pred_check_branch
      %12 = sbr.rel (0) target = $region5
    $region4: #{tpu_custom_call.1} parent=1 // pred_region
      %s14 = ssub.s32 128, 128
      %15 = vsyncadd [#allocation3], %s14
      %s17 = sshll.u32 [#allocation2], 4
      %s18 = int_to_ptr.vmem [resolvable:$true] %s17
      %20 = dma.hbm_to_vmem [thread:$0]  %s0, 128, %s18, [#allocation3]
    $region5: #{tpu_custom_call.1} parent=1 // pred_fallthru
      _
    // Predicated region
    $region6: #{tpu_custom_call.1} parent=1 // pred_check
      _
    $region7: #{tpu_custom_call.1} parent=1 // pred_check_branch
      %22 = sbr.rel (0) target = $region9
    $region8: #{tpu_custom_call.1} parent=1 // pred_region
      %s24 = ssub.s32 1024, 1024
      %25 = vsyncadd [#allocation6], %s24
      %s26 = sshll.u32 [#allocation5], 4
      %s27 = int_to_ptr.vmem [resolvable:$true] %s26
      %32 = dma.hbm_to_vmem [thread:$0]  %s1, 1024, %s27, [#allocation6], 64, 64, 4
    $region9: #{tpu_custom_call.1} parent=1 // pred_fallthru
      _
    // Predicated region
    $region10: #{tpu_custom_call.1} parent=1 // pred_check
      _
    $region11: #{tpu_custom_call.1} parent=1 // pred_check_branch
      %34 = sbr.rel (0) target = $region13
    $region12: #{tpu_custom_call.1} parent=1 // pred_region
      _
    $region13: #{tpu_custom_call.1} parent=1 // pred_fallthru
      _
    // Predicated region
    $region14: #{tpu_custom_call.1} parent=1 // pred_check
      _
    $region15: #{tpu_custom_call.1} parent=1 // pred_check_branch
      %36 = sbr.rel (0) target = $region17
    $region16: #{tpu_custom_call.1} parent=1 // pred_region
      %37 = dma.done [#allocation3], 128
    $region17: #{tpu_custom_call.1} parent=1 // pred_fallthru
      _
    // Predicated region
    $region18: #{tpu_custom_call.1} parent=1 // pred_check
      _
    $region19: #{tpu_custom_call.1} parent=1 // pred_check_branch
      %39 = sbr.rel (0) target = $region21
    $region20: #{tpu_custom_call.1} parent=1 // pred_region
      %40 = dma.done [#allocation6], 1024
    $region21: #{tpu_custom_call.1} parent=1 // pred_fallthru
      _
    %v42 = vld [vmem:[#allocation2] sm:$0xff]
    %v43 = vlaneseq
    %v44 = vshrl.u32 %v43, 7
    %v45 = vsub.s32 0, %v44
    %v46 = vrot.slane %v42, %v45
    %48 = vbcast.lane.b32.xlu0 %v46, 256
    %v49 = vpop.permute.xlu0 %48
    %v50 = vlaneseq
    %v51 = vshrl.u32 %v50, 7
    %v52 = vsub.s32 1, %v51
    %v53 = vrot.slane %v42, %v52
    %55 = vbcast.lane.b32.xlu0 %v53, 256
    %v56 = vpop.permute.xlu0 %55
    %v57 = vlaneseq
    %v58 = vshrl.u32 %v57, 7
    %v59 = vsub.s32 2, %v58
    %v60 = vrot.slane %v42, %v59
    %62 = vbcast.lane.b32.xlu0 %v60, 256
    %v63 = vpop.permute.xlu0 %62
    %v64 = vlaneseq
    %v65 = vshrl.u32 %v64, 7
    %v66 = vsub.s32 3, %v65
    %v67 = vrot.slane %v42, %v66
    %69 = vbcast.lane.b32.xlu0 %v67, 256
    %v70 = vpop.permute.xlu0 %69
    %v71 = vlaneseq
    %v72 = vshrl.u32 %v71, 7
    %v73 = vsub.s32 4, %v72
    %v74 = vrot.slane %v42, %v73
    %76 = vbcast.lane.b32.xlu0 %v74, 256
    %v77 = vpop.permute.xlu0 %76
    %v78 = vlaneseq
    %v79 = vshrl.u32 %v78, 7
    %v80 = vsub.s32 5, %v79
    %v81 = vrot.slane %v42, %v80
    %83 = vbcast.lane.b32.xlu0 %v81, 256
    %v84 = vpop.permute.xlu0 %83
    %v85 = vlaneseq
    %v86 = vshrl.u32 %v85, 7
    %v87 = vsub.s32 6, %v86
    %v88 = vrot.slane %v42, %v87
    %90 = vbcast.lane.b32.xlu0 %v88, 256
    %v91 = vpop.permute.xlu0 %90
    %v92 = vlaneseq
    %v93 = vshrl.u32 %v92, 7
    %v94 = vsub.s32 7, %v93
    %v95 = vrot.slane %v42, %v94
    %97 = vbcast.lane.b32.xlu0 %v95, 256
    %v98 = vpop.permute.xlu0 %97
    %v99 = vlaneseq
    %v100 = vand.u32 %v99, 127
    %vm101 = vcmp.eq.s32.totalorder %v49, %v100
    %vm102 = vcmp.eq.s32.totalorder %v56, %v100
    %vm103 = vcmp.eq.s32.totalorder %v63, %v100
    %vm104 = vcmp.eq.s32.totalorder %v70, %v100
    %vm105 = vcmp.eq.s32.totalorder %v77, %v100
    %vm106 = vcmp.eq.s32.totalorder %v84, %v100
    %vm107 = vcmp.eq.s32.totalorder %v91, %v100
    %vm108 = vcmp.eq.s32.totalorder %v98, %v100
    %v109 = vsel %vm101, 1, 0
    %v110 = vsel %vm102, 1, 0
    %v111 = vsel %vm103, 1, 0
    %v112 = vsel %vm104, 1, 0
    %v113 = vsel %vm105, 1, 0
    %v114 = vsel %vm106, 1, 0
    %v115 = vsel %vm107, 1, 0
    %v116 = vsel %vm108, 1, 0
    %v117 = vcvt.s32.f32 %v109
    %v118 = vcvt.s32.f32 %v110
    %v119 = vcvt.s32.f32 %v111
    %v120 = vcvt.s32.f32 %v112
    %v121 = vcvt.s32.f32 %v113
    %v122 = vcvt.s32.f32 %v114
    %v123 = vcvt.s32.f32 %v115
    %v124 = vcvt.s32.f32 %v116
    %v125 = vrot.slane %v117, 4
    %v126 = vadd.f32 %v117, %v125
    %v127 = vrot.slane %v126, 2
    %v128 = vadd.f32 %v126, %v127
    %v129 = vrot.slane %v128, 1
    %v130 = vadd.f32 %v128, %v129
    %v131 = vrot.slane %v118, 4
    %v132 = vadd.f32 %v118, %v131
    %v133 = vrot.slane %v132, 2
    %v134 = vadd.f32 %v132, %v133
    %v135 = vrot.slane %v134, 1
    %v136 = vadd.f32 %v134, %v135
    %v137 = vrot.slane %v119, 4
    %v138 = vadd.f32 %v119, %v137
    %v139 = vrot.slane %v138, 2
    %v140 = vadd.f32 %v138, %v139
    %v141 = vrot.slane %v140, 1
    %v142 = vadd.f32 %v140, %v141
    %v143 = vrot.slane %v120, 4
    %v144 = vadd.f32 %v120, %v143
    %v145 = vrot.slane %v144, 2
    %v146 = vadd.f32 %v144, %v145
    %v147 = vrot.slane %v146, 1
    %v148 = vadd.f32 %v146, %v147
    %v149 = vrot.slane %v121, 4
    %v150 = vadd.f32 %v121, %v149
    %v151 = vrot.slane %v150, 2
    %v152 = vadd.f32 %v150, %v151
    %v153 = vrot.slane %v152, 1
    %v154 = vadd.f32 %v152, %v153
    %v155 = vrot.slane %v122, 4
    %v156 = vadd.f32 %v122, %v155
    %v157 = vrot.slane %v156, 2
    %v158 = vadd.f32 %v156, %v157
    %v159 = vrot.slane %v158, 1
    %v160 = vadd.f32 %v158, %v159
    %v161 = vrot.slane %v123, 4
    %v162 = vadd.f32 %v123, %v161
    %v163 = vrot.slane %v162, 2
    %v164 = vadd.f32 %v162, %v163
    %v165 = vrot.slane %v164, 1
    %v166 = vadd.f32 %v164, %v165
    %v167 = vrot.slane %v124, 4
    %v168 = vadd.f32 %v124, %v167
    %v169 = vrot.slane %v168, 2
    %v170 = vadd.f32 %v168, %v169
    %v171 = vrot.slane %v170, 1
    %v172 = vadd.f32 %v170, %v171
    %v173 = vpack.c.bf16 %v130, %v130
    %v174 = vpack.c.bf16 %v136, %v136
    %v175 = vpack.c.bf16 %v142, %v142
    %v176 = vpack.c.bf16 %v148, %v148
    %v177 = vpack.c.bf16 %v154, %v154
    %v178 = vpack.c.bf16 %v160, %v160
    %v179 = vpack.c.bf16 %v166, %v166
    %v180 = vpack.c.bf16 %v172, %v172
    %v181 = vld [vmem:[#allocation5] sm:$0xf]
    %v182 = vld [vmem:[#allocation5 + $0x4] sm:$0xf]
    %v183 = vld [vmem:[#allocation5 + $0x8] sm:$0xf]
    %v184 = vld [vmem:[#allocation5 + $0xc] sm:$0xf]
    %v185 = vld [vmem:[#allocation5 + $0x10] sm:$0xf]
    %v186 = vld [vmem:[#allocation5 + $0x14] sm:$0xf]
    %v187 = vld [vmem:[#allocation5 + $0x18] sm:$0xf]
    %v188 = vld [vmem:[#allocation5 + $0x1c] sm:$0xf]
    %v189 = vld [vmem:[#allocation5 + $0x20] sm:$0xf]
    %v190 = vld [vmem:[#allocation5 + $0x24] sm:$0xf]
    %v191 = vld [vmem:[#allocation5 + $0x28] sm:$0xf]
    %v192 = vld [vmem:[#allocation5 + $0x2c] sm:$0xf]
    %v193 = vld [vmem:[#allocation5 + $0x30] sm:$0xf]
    %v194 = vld [vmem:[#allocation5 + $0x34] sm:$0xf]
    %v195 = vld [vmem:[#allocation5 + $0x38] sm:$0xf]
    %v196 = vld [vmem:[#allocation5 + $0x3c] sm:$0xf]
    %v197 = vld [vmem:[%s2] sm:$0x1]
    %v199 = vlaneseq
    %v200 = vshrl.u32 %v199, 7
    %v201 = vsub.s32 0, %v200
    %v202 = vrot.slane %v197, %v201
    %v212 = vunpack.c.l.b16 %v173
    %v213 = vunpack.c.l.b16 %v174
    %v214 = vunpack.c.l.b16 %v175
    %v215 = vunpack.c.l.b16 %v176
    %v216 = vunpack.c.l.b16 %v177
    %v217 = vunpack.c.l.b16 %v178
    %v218 = vunpack.c.l.b16 %v179
    %v219 = vunpack.c.l.b16 %v180
    %vm220 = vcmask 1041409
    %v221 = vsel %vm220, %v213, %v212
    %vm222 = vcmask 1042434
    %v223 = vsel %vm222, %v214, %v221
    %vm224 = vcmask 1043459
    %v225 = vsel %vm224, %v215, %v223
    %vm226 = vcmask 1044484
    %v227 = vsel %vm226, %v216, %v225
    %vm228 = vcmask 1045509
    %v229 = vsel %vm228, %v217, %v227
    %vm230 = vcmask 1046534
    %v231 = vsel %vm230, %v218, %v229
    %vm232 = vcmask 1047559
    %v233 = vsel %vm232, %v219, %v231
    %v234 = vpack.c.b16 %v233, %v233
    %v252 = vunpack.c.l.b16 %v181
    %v253 = vunpack.c.l.b16 %v182
    %v254 = vunpack.c.l.b16 %v183
    %v255 = vunpack.c.l.b16 %v184
    %v256 = vunpack.c.l.b16 %v185
    %v257 = vunpack.c.l.b16 %v186
    %v258 = vunpack.c.l.b16 %v187
    %v259 = vunpack.c.l.b16 %v188
    %v260 = vunpack.c.l.b16 %v189
    %v261 = vunpack.c.l.b16 %v190
    %v262 = vunpack.c.l.b16 %v191
    %v263 = vunpack.c.l.b16 %v192
    %v264 = vunpack.c.l.b16 %v193
    %v265 = vunpack.c.l.b16 %v194
    %v266 = vunpack.c.l.b16 %v195
    %v267 = vunpack.c.l.b16 %v196
    %v268 = vpack.c.b16 %v253, %v252
    %v269 = vpack.c.b16 %v255, %v254
    %v270 = vpack.c.b16 %v257, %v256
    %v271 = vpack.c.b16 %v259, %v258
    %v272 = vpack.c.b16 %v261, %v260
    %v273 = vpack.c.b16 %v263, %v262
    %v274 = vpack.c.b16 %v265, %v264
    %v275 = vpack.c.b16 %v267, %v266
    %284 = vmatprep.subr.bf16.mxu0 0
    %285 = vmatpush1.bf16.msra.mxu0 %v268
    %286 = vmatprep.subr.bf16.mxu0 0
    %287 = vmatpush1.bf16.msra.mxu0 %v269
    %288 = vmatprep.subr.bf16.mxu0 0
    %289 = vmatpush1.bf16.msra.mxu0 %v270
    %290 = vmatprep.subr.bf16.mxu0 0
    %291 = vmatpush1.bf16.msra.mxu0 %v271
    %292 = vmatprep.subr.bf16.mxu0 0
    %293 = vmatpush1.bf16.msra.mxu0 %v272
    %294 = vmatprep.subr.bf16.mxu0 0
    %295 = vmatpush1.bf16.msra.mxu0 %v273
    %296 = vmatprep.subr.bf16.mxu0 0
    %297 = vmatpush1.bf16.msra.mxu0 %v274
    %298 = vmatprep.subr.bf16.mxu0 0
    %299 = vmatpush1.bf16.msra.mxu0 %v275
    %300 = vmatprep.subr.bf16.mxu0 0
    %301 = vmatpush1.bf16.msra.mxu0 0
    %302 = vmatprep.subr.bf16.mxu0 0
    %303 = vmatpush1.bf16.msra.mxu0 0
    %304 = vmatprep.subr.bf16.mxu0 0
    %305 = vmatpush1.bf16.msra.mxu0 0
    %306 = vmatprep.subr.bf16.mxu0 0
    %307 = vmatpush1.bf16.msra.mxu0 0
    %308 = vmatprep.subr.bf16.mxu0 0
    %309 = vmatpush1.bf16.msra.mxu0 0
    %310 = vmatprep.subr.bf16.mxu0 0
    %311 = vmatpush1.bf16.msra.mxu0 0
    %312 = vmatprep.subr.bf16.mxu0 0
    %313 = vmatpush1.bf16.msra.mxu0 0
    %314 = vmatprep.subr.bf16.mxu0 0
    %315 = vmatpush1.bf16.msra.mxu0 0
    %316 = vmatprep.mubr.bf16.mxu0 0
    %317 = vmatmul.mubr.bf16.gmra.mrb[0].mxu0 %v234
    %v318 = vpop.f32.mrb[0].mxu0
    %v319 = vadd.f32 %v202, %v318
    %v320 = vpop.f32.mrb[0].mxu0
    %v321 = vpop.f32.mrb[0].mxu0
    %v322 = vpop.f32.mrb[0].mxu0
    %323 = vdwg.mxu0
    %v324 = vmax.f32 %v319, 0.0
    %v325 = vpack.c.bf16 %v324, %v324
    %326 = vst [vmem:[#allocation7] sm:$0xf] %v325
    // Predicated region
    $region22: #{tpu_custom_call.1} parent=1 // pred_check
      _
    $region23: #{tpu_custom_call.1} parent=1 // pred_check_branch
      %328 = sbr.rel (0) target = $region25
    $region24: #{tpu_custom_call.1} parent=1 // pred_region
      %s330 = ssub.s32 64, 64
      %331 = vsyncadd [#allocation4], %s330
      %s333 = sshll.u32 [#allocation7], 4
      %s334 = int_to_ptr.vmem [resolvable:$true] %s333
      %336 = dma.vmem_to_hbm [thread:$0]  %s334, 64, %s3, [#allocation4]
    $region25: #{tpu_custom_call.1} parent=1 // pred_fallthru
      _
    // Predicated region
    $region26: #{tpu_custom_call.1} parent=1 // pred_check
      _
    $region27: #{tpu_custom_call.1} parent=1 // pred_check_branch
      %338 = sbr.rel (0) target = $region29
    $region28: #{tpu_custom_call.1} parent=1 // pred_region
      %339 = dma.done [#allocation4], 64
    $region29: #{tpu_custom_call.1} parent=1 // pred_fallthru
      _
    %340 = vsyncpa [#allocation3], 1
    %341 = vsyncpa [#allocation6], 1
    %342 = vsyncpa [#allocation4], 1

</llo_original>
